<compile_context>
chip_gen: v5e
topology: v5e:2x2
jax: 0.10.0
libtpu: 0.0.40
codegen_flags: <defaults>
</compile_context>

<pallas_src>
from functools import partial

import jax
import jax.numpy as jnp
from jax.experimental import pallas as pl
from jax.experimental.pallas import tpu as pltpu

LANE = 128          # lane-dense padded output width (>= action_dim)
MAX_TILE_B = 512    # batch rows per grid step for large batches (multiple of 256)

_bf16_epi_cache = None


def _use_bf16_epilogue():
    """bf16 elementwise epilogue only where the VPU supports bf16 (v6e/v7x)."""
    global _bf16_epi_cache
    if _bf16_epi_cache is None:
        try:
            kind = jax.devices()[0].device_kind.lower()
            _bf16_epi_cache = not any(v in kind for v in ("v2", "v3", "v4", "v5"))
        except Exception:
            _bf16_epi_cache = False
    return _bf16_epi_cache


def _batch_tiling(B):
    """Pick (tile_b, padded_B). Small B pads only to bf16 sublane granularity."""
    b16 = ((B + 15) // 16) * 16
    if b16 <= MAX_TILE_B:
        return b16, b16                       # single tile == full (padded) batch
    tile = MAX_TILE_B                         # >=2 grid steps -> both v7x TCs busy
    return tile, pl.cdiv(b16, tile) * tile


def actor_kernel(x_ref, w1_ref, b1_ref, w2_ref, b2_ref, w3_ref, b3_ref, out_ref,
                 *, bf16_epilogue):
    # Cast the f32 state tile to bf16 in-kernel (no wrapper-side cast pass).
    x = x_ref[...].astype(jnp.bfloat16)

    # fc1 (+bias, ReLU): bf16 MXU operands, f32 accumulation.
    acc1 = jnp.dot(x, w1_ref[...], preferred_element_type=jnp.float32)
    if bf16_epilogue:
        h1 = jnp.maximum(acc1.astype(jnp.bfloat16) + b1_ref[...].astype(jnp.bfloat16), 0)
    else:
        h1 = jnp.maximum(acc1 + b1_ref[...], 0.0).astype(jnp.bfloat16)

    # fc2 (+bias, ReLU)
    acc2 = jnp.dot(h1, w2_ref[...], preferred_element_type=jnp.float32)
    if bf16_epilogue:
        h2 = jnp.maximum(acc2.astype(jnp.bfloat16) + b2_ref[...].astype(jnp.bfloat16), 0)
    else:
        h2 = jnp.maximum(acc2 + b2_ref[...], 0.0).astype(jnp.bfloat16)

    # fc3 -> logits padded to 128 lanes; padded bias cols are -1e30 (f32) so
    # exp() of those lanes underflows to exactly 0.  Softmax stays f32.
    logits = jnp.dot(h2, w3_ref[...], preferred_element_type=jnp.float32) + b3_ref[...]
    m = jnp.max(logits, axis=-1, keepdims=True)
    e = jnp.exp(logits - m)
    denom = jnp.sum(e, axis=-1, keepdims=True)
    out_ref[...] = (e / denom).astype(out_ref.dtype)   # exact divide -> rows sum to 1


def prepare_actor_params(params):
    """One-time prep: pad fc3 to LANE cols, cast weights to bf16, biases to f32.

    Call once and reuse; keeps pad/cast passes out of the per-step path."""
    w1, b1, w2, b2, w3, b3 = params
    action_dim = w3.shape[1]
    assert action_dim <= LANE
    pad_a = LANE - action_dim
    w3p = jnp.pad(w3, ((0, 0), (0, pad_a)))
    b3p = jnp.pad(b3.reshape(1, -1), ((0, 0), (0, pad_a)), constant_values=-1e30)
    return {
        "w1": w1.astype(jnp.bfloat16), "b1": b1.reshape(1, -1).astype(jnp.float32),
        "w2": w2.astype(jnp.bfloat16), "b2": b2.reshape(1, -1).astype(jnp.float32),
        "w3": w3p.astype(jnp.bfloat16), "b3": b3p.astype(jnp.float32),  # b3 stays f32!
        "action_dim": action_dim,
    }


def actor_forward(state, prepped):
    """state: [B, state_dim] f32.  Returns action probabilities [B, action_dim] bf16."""
    w1, b1 = prepped["w1"], prepped["b1"]
    w2, b2 = prepped["w2"], prepped["b2"]
    w3, b3 = prepped["w3"], prepped["b3"]
    action_dim = prepped["action_dim"]

    B, state_dim = state.shape
    h1_dim, h2_dim = w1.shape[1], w2.shape[1]

    tile, B_pad = _batch_tiling(B)
    x = state if B_pad == B else jnp.pad(state, ((0, B_pad - B), (0, 0)))

    kernel = partial(actor_kernel, bf16_epilogue=_use_bf16_epilogue())
    resident = lambda shape: pl.BlockSpec(shape, lambda i: (0, 0))  # VMEM-resident

    out = pl.pallas_call(
        kernel,
        out_shape=jax.ShapeDtypeStruct((B_pad, LANE), jnp.bfloat16),
        grid=(B_pad // tile,),
        in_specs=[
            pl.BlockSpec((tile, state_dim), lambda i: (i, 0)),   # pipelined x tile (f32)
            resident((state_dim, h1_dim)), resident((1, h1_dim)),
            resident((h1_dim, h2_dim)),    resident((1, h2_dim)),
            resident((h2_dim, LANE)),      resident((1, LANE)),
        ],
        out_specs=pl.BlockSpec((tile, LANE), lambda i: (i, 0)),
        compiler_params=pltpu.CompilerParams(
            dimension_semantics=("parallel",),   # v7x: shard batch tiles across TCs
        ),
    )(x, w1, b1, w2, b2, w3, b3)

    # TODO(synk): if profiling shows the kernel is still output-bound, compact the
    # action_dim real columns of 16 rows into one 128-lane row in-kernel instead
    # of slicing the padded slab here.
    return out[:B, :action_dim]


def init_params(key, state_dim, action_dim):
    """Deterministic synthetic init (shapes from Actor.__init__), stored as [in, out]."""
    ks = jax.random.split(key, 6)

    def lin(kw, kb, fan_in, fan_out):
        bound = 1.0 / jnp.sqrt(fan_in)
        w = jax.random.uniform(kw, (fan_in, fan_out), jnp.float32, -bound, bound)
        b = jax.random.uniform(kb, (1, fan_out), jnp.float32, -bound, bound)
        return w, b

    w1, b1 = lin(ks[0], ks[1], state_dim, 256)
    w2, b2 = lin(ks[2], ks[3], 256, 128)
    w3, b3 = lin(ks[4], ks[5], 128, action_dim)
    return (w1, b1, w2, b2, w3, b3)


if __name__ == "__main__":
    key = jax.random.PRNGKey(0)
    k_params, k_state = jax.random.split(key)

    B, state_dim, action_dim = 64, 32, 8
    raw_params = init_params(k_params, state_dim, action_dim)
    prepped = prepare_actor_params(raw_params)           # one-time weight prep
    state = jax.random.normal(k_state, (B, state_dim), jnp.float32)

    probs = actor_forward(state, prepped)
    probs = jax.block_until_ready(probs)
    probs_f32 = probs.astype(jnp.float32)

    # Reference in plain f32 JAX (kernel uses bf16 matmul operands / bf16 output
    # -> looser tolerance).
    w1, b1, w2, b2, w3, b3 = raw_params
    h1 = jnp.maximum(state @ w1 + b1, 0.0)
    h2 = jnp.maximum(h1 @ w2 + b2, 0.0)
    ref = jax.nn.softmax(h2 @ w3 + b3, axis=-1)

    assert probs.shape == (B, action_dim)
    assert bool(jnp.all(jnp.isfinite(probs_f32)))
    # exact f32 normalization in-kernel; only bf16 output rounding remains (~2e-3)
    assert jnp.allclose(jnp.sum(probs_f32, axis=-1), 1.0, atol=1e-2)
    assert jnp.allclose(probs_f32, ref, atol=3e-2, rtol=3e-2)

    print("KERNEL_OK")
</pallas_src>

<mosaic_0001>
module attributes {stable_mosaic.version = 11 : i64} {
  func.func @actor_kernel(%arg0: i32, %arg1: memref<64x32xf32, #tpu.memory_space<vmem>>, %arg2: memref<32x256xbf16, #tpu.memory_space<vmem>>, %arg3: memref<1x256xf32, #tpu.memory_space<vmem>>, %arg4: memref<256x128xbf16, #tpu.memory_space<vmem>>, %arg5: memref<1x128xf32, #tpu.memory_space<vmem>>, %arg6: memref<128x128xbf16, #tpu.memory_space<vmem>>, %arg7: memref<1x128xf32, #tpu.memory_space<vmem>>, %arg8: memref<64x128xbf16, #tpu.memory_space<vmem>>) attributes {dimension_semantics = [#tpu.dimension_semantics<parallel>], iteration_bounds = array<i64: 1>, scalar_prefetch = 0 : i64, scratch_operands = 0 : i64, tpu.core_type = #tpu.core_type<tc>, window_params = [{transform_indices = @transform_0, window_bounds = array<i64: 64, 32>}, {pipeline_mode = #tpu.pipeline_mode<synchronous>, transform_indices = @transform_1, window_bounds = array<i64: 32, 256>}, {pipeline_mode = #tpu.pipeline_mode<synchronous>, transform_indices = @transform_2, window_bounds = array<i64: 1, 256>}, {pipeline_mode = #tpu.pipeline_mode<synchronous>, transform_indices = @transform_3, window_bounds = array<i64: 256, 128>}, {pipeline_mode = #tpu.pipeline_mode<synchronous>, transform_indices = @transform_4, window_bounds = array<i64: 1, 128>}, {pipeline_mode = #tpu.pipeline_mode<synchronous>, transform_indices = @transform_5, window_bounds = array<i64: 128, 128>}, {pipeline_mode = #tpu.pipeline_mode<synchronous>, transform_indices = @transform_6, window_bounds = array<i64: 1, 128>}, {transform_indices = @transform_7, window_bounds = array<i64: 64, 128>}]} {
    %c0 = arith.constant 0 : index
    %c0_0 = arith.constant 0 : index
    %0 = vector.load %arg1[%c0, %c0_0] : memref<64x32xf32, #tpu.memory_space<vmem>>, vector<64x32xf32>
    %1 = arith.truncf %0 : vector<64x32xf32> to vector<64x32xbf16>
    %c0_1 = arith.constant 0 : index
    %c0_2 = arith.constant 0 : index
    %2 = vector.load %arg2[%c0_1, %c0_2] : memref<32x256xbf16, #tpu.memory_space<vmem>>, vector<32x256xbf16>
    %cst = arith.constant dense<0.000000e+00> : vector<64x256xf32>
    %3 = tpu.matmul %1, %2, %cst {dimension_numbers = #tpu.dot_dimension_numbers<[1], [0], [0], [1], [0, 0, 1, 1], [], []>} : vector<64x32xbf16>, vector<32x256xbf16>, vector<64x256xf32> -> vector<64x256xf32>
    %4 = arith.truncf %3 : vector<64x256xf32> to vector<64x256xbf16>
    %c0_3 = arith.constant 0 : index
    %c0_4 = arith.constant 0 : index
    %5 = vector.load %arg3[%c0_3, %c0_4] : memref<1x256xf32, #tpu.memory_space<vmem>>, vector<1x256xf32>
    %6 = arith.truncf %5 : vector<1x256xf32> to vector<1x256xbf16>
    %7 = vector.broadcast %6 : vector<1x256xbf16> to vector<64x256xbf16>
    %8 = arith.addf %4, %7 : vector<64x256xbf16>
    %cst_5 = arith.constant 0.000000e+00 : bf16
    %9 = vector.broadcast %cst_5 : bf16 to vector<64x256xbf16>
    %10 = arith.maximumf %8, %9 : vector<64x256xbf16>
    %c0_6 = arith.constant 0 : index
    %c0_7 = arith.constant 0 : index
    %11 = vector.load %arg4[%c0_6, %c0_7] : memref<256x128xbf16, #tpu.memory_space<vmem>>, vector<256x128xbf16>
    %cst_8 = arith.constant dense<0.000000e+00> : vector<64x128xf32>
    %12 = tpu.matmul %10, %11, %cst_8 {dimension_numbers = #tpu.dot_dimension_numbers<[1], [0], [0], [1], [0, 0, 1, 1], [], []>} : vector<64x256xbf16>, vector<256x128xbf16>, vector<64x128xf32> -> vector<64x128xf32>
    %13 = arith.truncf %12 : vector<64x128xf32> to vector<64x128xbf16>
    %c0_9 = arith.constant 0 : index
    %c0_10 = arith.constant 0 : index
    %14 = vector.load %arg5[%c0_9, %c0_10] : memref<1x128xf32, #tpu.memory_space<vmem>>, vector<1x128xf32>
    %15 = arith.truncf %14 : vector<1x128xf32> to vector<1x128xbf16>
    %16 = vector.broadcast %15 : vector<1x128xbf16> to vector<64x128xbf16>
    %17 = arith.addf %13, %16 : vector<64x128xbf16>
    %cst_11 = arith.constant 0.000000e+00 : bf16
    %18 = vector.broadcast %cst_11 : bf16 to vector<64x128xbf16>
    %19 = arith.maximumf %17, %18 : vector<64x128xbf16>
    %c0_12 = arith.constant 0 : index
    %c0_13 = arith.constant 0 : index
    %20 = vector.load %arg6[%c0_12, %c0_13] : memref<128x128xbf16, #tpu.memory_space<vmem>>, vector<128x128xbf16>
    %cst_14 = arith.constant dense<0.000000e+00> : vector<64x128xf32>
    %21 = tpu.matmul %19, %20, %cst_14 {dimension_numbers = #tpu.dot_dimension_numbers<[1], [0], [0], [1], [0, 0, 1, 1], [], []>} : vector<64x128xbf16>, vector<128x128xbf16>, vector<64x128xf32> -> vector<64x128xf32>
    %c0_15 = arith.constant 0 : index
    %c0_16 = arith.constant 0 : index
    %22 = vector.load %arg7[%c0_15, %c0_16] : memref<1x128xf32, #tpu.memory_space<vmem>>, vector<1x128xf32>
    %23 = vector.broadcast %22 : vector<1x128xf32> to vector<64x128xf32>
    %24 = arith.addf %21, %23 : vector<64x128xf32>
    %cst_17 = arith.constant dense<0xFF800000> : vector<64xf32>
    %25 = vector.multi_reduction <maximumf>, %24, %cst_17 [1] : vector<64x128xf32> to vector<64xf32>
    %26 = vector.shape_cast %25 : vector<64xf32> to vector<64x1xf32>
    %27 = vector.broadcast %26 : vector<64x1xf32> to vector<64x128xf32>
    %28 = arith.subf %24, %27 : vector<64x128xf32>
    %29 = math.exp %28 : vector<64x128xf32>
    %cst_18 = arith.constant dense<0.000000e+00> : vector<64xf32>
    %30 = vector.multi_reduction <add>, %29, %cst_18 [1] : vector<64x128xf32> to vector<64xf32>
    %31 = vector.shape_cast %30 : vector<64xf32> to vector<64x1xf32>
    %32 = vector.broadcast %31 : vector<64x1xf32> to vector<64x128xf32>
    %33 = arith.divf %29, %32 : vector<64x128xf32>
    %34 = arith.truncf %33 : vector<64x128xf32> to vector<64x128xbf16>
    %c0_19 = arith.constant 0 : index
    %c0_20 = arith.constant 0 : index
    %35 = vector.load %arg8[%c0_19, %c0_20] : memref<64x128xbf16, #tpu.memory_space<vmem>>, vector<64x128xbf16>
    tpu.vector_store %arg8[%c0_19, %c0_20], %34 {strides = array<i32>} : memref<64x128xbf16, #tpu.memory_space<vmem>>, vector<64x128xbf16>,
    return
  }
  func.func @transform_0(%arg0: i32) -> (i32, i32) {
    %c0_i32 = arith.constant 0 : i32
    %c0_i32_0 = arith.constant 0 : i32
    return %arg0, %c0_i32 : i32, i32
  }
  func.func @transform_1(%arg0: i32) -> (i32, i32) {
    %c0_i32 = arith.constant 0 : i32
    %c0_i32_0 = arith.constant 0 : i32
    %c0_i32_1 = arith.constant 0 : i32
    return %c0_i32, %c0_i32_0 : i32, i32
  }
  func.func @transform_2(%arg0: i32) -> (i32, i32) {
    %c0_i32 = arith.constant 0 : i32
    %c0_i32_0 = arith.constant 0 : i32
    %c0_i32_1 = arith.constant 0 : i32
    return %c0_i32, %c0_i32_0 : i32, i32
  }
  func.func @transform_3(%arg0: i32) -> (i32, i32) {
    %c0_i32 = arith.constant 0 : i32
    %c0_i32_0 = arith.constant 0 : i32
    %c0_i32_1 = arith.constant 0 : i32
    return %c0_i32, %c0_i32_0 : i32, i32
  }
  func.func @transform_4(%arg0: i32) -> (i32, i32) {
    %c0_i32 = arith.constant 0 : i32
    %c0_i32_0 = arith.constant 0 : i32
    %c0_i32_1 = arith.constant 0 : i32
    return %c0_i32, %c0_i32_0 : i32, i32
  }
  func.func @transform_5(%arg0: i32) -> (i32, i32) {
    %c0_i32 = arith.constant 0 : i32
    %c0_i32_0 = arith.constant 0 : i32
    %c0_i32_1 = arith.constant 0 : i32
    return %c0_i32, %c0_i32_0 : i32, i32
  }
  func.func @transform_6(%arg0: i32) -> (i32, i32) {
    %c0_i32 = arith.constant 0 : i32
    %c0_i32_0 = arith.constant 0 : i32
    %c0_i32_1 = arith.constant 0 : i32
    return %c0_i32, %c0_i32_0 : i32, i32
  }
  func.func @transform_7(%arg0: i32) -> (i32, i32) {
    %c0_i32 = arith.constant 0 : i32
    %c0_i32_0 = arith.constant 0 : i32
    return %arg0, %c0_i32 : i32, i32
  }
}

</mosaic_0001>

<llo_original>
// kernel: tpu_custom_call.1
$region0: #{tpu_custom_call.1}
  #allocation0 [shape = 'u32[]', space=smem, size = 0x4, offset = 0x4, fixed_abs, tag = 'smem constant byte address 0x4 - core index']
  #allocation1 [shape = 'u32[72,128]{1,0:T(1,128)}', space=vmem, size = 0x9000, scoped, tag = 'internal scratch']
  %s0 = inlined_call_operand.vmem [shape: f32[64,32], index: 0, kind: input, shape index: {}]
  %s1 = inlined_call_operand.vmem [shape: bf16[32,256], index: 1, kind: input, shape index: {}]
  %s2 = inlined_call_operand.vmem [shape: f32[1,256], index: 2, kind: input, shape index: {}]
  %s3 = inlined_call_operand.hbm [shape: bf16[256,128], index: 3, kind: input, shape index: {}]
  %s4 = inlined_call_operand.vmem [shape: f32[1,128], index: 4, kind: input, shape index: {}]
  %s5 = inlined_call_operand.vmem [shape: bf16[128,128], index: 5, kind: input, shape index: {}]
  %s6 = inlined_call_operand.vmem [shape: f32[1,128], index: 6, kind: input, shape index: {}]
  %s7 = inlined_call_operand.hbm [shape: bf16[64,128], index: 7, kind: output, shape index: {}]
  %s8 = sld [smem:[#allocation0]]
  $region42: #{tpu_custom_call.1} parent=0
    _
  %s10 = ssub.s32 1, %s8
  %s11 = scalar_select 0, %s10, %s8
  $region1: #{tpu_custom_call.1} parent=0
    #allocation2 [shape = 'u8[65536]{0}', space=vmem, size = 0x10000, scoped, tag = 'input window, operand 3, single buffered']
    #allocation3 [shape = 's32[1]{0}', space=sflag, size = 0x4, scoped, tag = 'scoped memory for tpu_custom_call.1']
    #allocation4 [shape = 's32[1]{0}', space=sflag, size = 0x4, scoped, tag = 'scoped memory for tpu_custom_call.1']
    #allocation5 [shape = 'u8[16384]{0}', space=vmem, size = 0x4000, scoped, tag = 'output window, operand 0, single buffered']
    %12 = vsyncpa [#allocation3], 0
    %13 = vsyncpa [#allocation4], 0
    // Predicated region
    $region2: #{tpu_custom_call.1} parent=1 // pred_check
      _
    $region3: #{tpu_custom_call.1} parent=1 // pred_check_branch
      %15 = sbr.rel (0) target = $region5
    $region4: #{tpu_custom_call.1} parent=1 // pred_region
      _
    $region5: #{tpu_custom_call.1} parent=1 // pred_fallthru
      _
    // Predicated region
    $region6: #{tpu_custom_call.1} parent=1 // pred_check
      _
    $region7: #{tpu_custom_call.1} parent=1 // pred_check_branch
      %17 = sbr.rel (0) target = $region9
    $region8: #{tpu_custom_call.1} parent=1 // pred_region
      _
    $region9: #{tpu_custom_call.1} parent=1 // pred_fallthru
      _
    // Predicated region
    $region10: #{tpu_custom_call.1} parent=1 // pred_check
      _
    $region11: #{tpu_custom_call.1} parent=1 // pred_check_branch
      %19 = sbr.rel (0) target = $region13
    $region12: #{tpu_custom_call.1} parent=1 // pred_region
      _
    $region13: #{tpu_custom_call.1} parent=1 // pred_fallthru
      _
    // Predicated region
    $region14: #{tpu_custom_call.1} parent=1 // pred_check
      _
    $region15: #{tpu_custom_call.1} parent=1 // pred_check_branch
      %21 = sbr.rel (0) target = $region17
    $region16: #{tpu_custom_call.1} parent=1 // pred_region
      %23 = vsyncadd [#allocation3], 0
      %s24 = sshll.u32 %s3, 4
      %s25 = int_to_ptr.hbm [resolvable:$true] %s24
      %s26 = sshll.u32 [#allocation2], 4
      %s27 = int_to_ptr.vmem [resolvable:$true] %s26
      %32 = dma.hbm_to_vmem [thread:$0]  %s25, 2048, %s27, [#allocation3], 64, 64, 4
    $region17: #{tpu_custom_call.1} parent=1 // pred_fallthru
      _
    // Predicated region
    $region18: #{tpu_custom_call.1} parent=1 // pred_check
      _
    $region19: #{tpu_custom_call.1} parent=1 // pred_check_branch
      %34 = sbr.rel (0) target = $region21
    $region20: #{tpu_custom_call.1} parent=1 // pred_region
      _
    $region21: #{tpu_custom_call.1} parent=1 // pred_fallthru
      _
    // Predicated region
    $region22: #{tpu_custom_call.1} parent=1 // pred_check
      _
    $region23: #{tpu_custom_call.1} parent=1 // pred_check_branch
      %36 = sbr.rel (0) target = $region25
    $region24: #{tpu_custom_call.1} parent=1 // pred_region
      _
    $region25: #{tpu_custom_call.1} parent=1 // pred_fallthru
      _
    // Predicated region
    $region26: #{tpu_custom_call.1} parent=1 // pred_check
      _
    $region27: #{tpu_custom_call.1} parent=1 // pred_check_branch
      %38 = sbr.rel (0) target = $region29
    $region28: #{tpu_custom_call.1} parent=1 // pred_region
      _
    $region29: #{tpu_custom_call.1} parent=1 // pred_fallthru
      _
    // Predicated region
    $region30: #{tpu_custom_call.1} parent=1 // pred_check
      _
    $region31: #{tpu_custom_call.1} parent=1 // pred_check_branch
      %40 = sbr.rel (0) target = $region33
    $region32: #{tpu_custom_call.1} parent=1 // pred_region
      %42 = dma.done [#allocation3], 2048
    $region33: #{tpu_custom_call.1} parent=1 // pred_fallthru
      _
    %v44 = vld [vmem:[%s0] sm:$0xff]
    %v45 = vld [vmem:[%s0 + $0x8] sm:$0xff]
    %v46 = vld [vmem:[%s0 + $0x10] sm:$0xff]
    %v47 = vld [vmem:[%s0 + $0x18] sm:$0xff]
    %v48 = vld [vmem:[%s0 + $0x20] sm:$0xff]
    %v49 = vld [vmem:[%s0 + $0x28] sm:$0xff]
    %v50 = vld [vmem:[%s0 + $0x30] sm:$0xff]
    %v51 = vld [vmem:[%s0 + $0x38] sm:$0xff]
    %v52 = vpack.c.bf16 %v45, %v44
    %v53 = vpack.c.bf16 %v47, %v46
    %v54 = vpack.c.bf16 %v49, %v48
    %v55 = vpack.c.bf16 %v51, %v50
    %v56 = vld [vmem:[%s1] sm:$0xff]
    %v57 = vld [vmem:[%s1 + $0x8] sm:$0xff]
    %v58 = vld [vmem:[%s1 + $0x10] sm:$0xff]
    %v59 = vld [vmem:[%s1 + $0x18] sm:$0xff]
    %v64 = vunpack.c.l.b16 %v56
    %v65 = vunpack.c.h.b16 %v56
    %v66 = vunpack.c.l.b16 %v57
    %v67 = vunpack.c.h.b16 %v57
    %v68 = vunpack.c.l.b16 %v58
    %v69 = vunpack.c.h.b16 %v58
    %v70 = vunpack.c.l.b16 %v59
    %v71 = vunpack.c.h.b16 %v59
    %v72 = vpack.c.b16 %v66, %v64
    %v73 = vpack.c.b16 %v67, %v65
    %v74 = vpack.c.b16 %v70, %v68
    %v75 = vpack.c.b16 %v71, %v69
    %vm80 = vcmask 261120
    %v82 = vsel %vm80, %v52, 0
    %v85 = vsel %vm80, %v53, 0
    %v88 = vsel %vm80, %v54, 0
    %v91 = vsel %vm80, %v55, 0
    %93 = vmatpush.bf16.msra.mxu0 0
    %94 = vmatpush.bf16.msra.mxu0 0
    %95 = vmatpush.bf16.msra.mxu0 0
    %96 = vmatpush.bf16.msra.mxu0 0
    %97 = vmatpush.bf16.msra.mxu0 0
    %98 = vmatpush.bf16.msra.mxu0 0
    %99 = vmatpush.bf16.msra.mxu0 %v74
    %100 = vmatpush.bf16.msra.mxu0 %v72
    %101 = vmatmul.bf16.gmra.mxu0 %v82
    %v102 = vpop.f32.mrf.mxu0
    %v103 = vadd.f32 0.0, %v102
    %v104 = vpop.f32.mrf.mxu0
    %v105 = vadd.f32 0.0, %v104
    %106 = vmatmul.bf16.gmra.mxu0 %v85
    %v107 = vpop.f32.mrf.mxu0
    %v108 = vadd.f32 0.0, %v107
    %v109 = vpop.f32.mrf.mxu0
    %v110 = vadd.f32 0.0, %v109
    %111 = vmatmul.bf16.gmra.mxu0 %v88
    %v112 = vpop.f32.mrf.mxu0
    %v113 = vadd.f32 0.0, %v112
    %v114 = vpop.f32.mrf.mxu0
    %v115 = vadd.f32 0.0, %v114
    %116 = vmatmul.bf16.gmra.mxu0 %v91
    %v117 = vpop.f32.mrf.mxu0
    %v118 = vadd.f32 0.0, %v117
    %v119 = vpop.f32.mrf.mxu0
    %v120 = vadd.f32 0.0, %v119
    %121 = vdwg.mxu0
    %122 = vmatpush.bf16.msra.mxu0 0
    %123 = vmatpush.bf16.msra.mxu0 0
    %124 = vmatpush.bf16.msra.mxu0 0
    %125 = vmatpush.bf16.msra.mxu0 0
    %126 = vmatpush.bf16.msra.mxu0 0
    %127 = vmatpush.bf16.msra.mxu0 0
    %128 = vmatpush.bf16.msra.mxu0 %v75
    %129 = vmatpush.bf16.msra.mxu0 %v73
    %130 = vmatmul.bf16.gmra.mxu0 %v82
    %v131 = vpop.f32.mrf.mxu0
    %v132 = vadd.f32 0.0, %v131
    %v133 = vpop.f32.mrf.mxu0
    %v134 = vadd.f32 0.0, %v133
    %135 = vmatmul.bf16.gmra.mxu0 %v85
    %v136 = vpop.f32.mrf.mxu0
    %v137 = vadd.f32 0.0, %v136
    %v138 = vpop.f32.mrf.mxu0
    %v139 = vadd.f32 0.0, %v138
    %140 = vmatmul.bf16.gmra.mxu0 %v88
    %v141 = vpop.f32.mrf.mxu0
    %v142 = vadd.f32 0.0, %v141
    %v143 = vpop.f32.mrf.mxu0
    %v144 = vadd.f32 0.0, %v143
    %145 = vmatmul.bf16.gmra.mxu0 %v91
    %v146 = vpop.f32.mrf.mxu0
    %v147 = vadd.f32 0.0, %v146
    %v148 = vpop.f32.mrf.mxu0
    %v149 = vadd.f32 0.0, %v148
    %150 = vdwg.mxu0
    %v151 = vpack.c.bf16 %v132, %v103
    %v152 = vpack.c.bf16 %v134, %v105
    %v153 = vpack.c.bf16 %v137, %v108
    %v154 = vpack.c.bf16 %v139, %v110
    %v155 = vpack.c.bf16 %v142, %v113
    %v156 = vpack.c.bf16 %v144, %v115
    %v157 = vpack.c.bf16 %v147, %v118
    %v158 = vpack.c.bf16 %v149, %v120
    %v159 = vld [vmem:[%s2] sm:$0x3]
    %v161 = vperm.slane %v159, 0
    %v162 = vperm.slane %v159, 1
    %v165 = vpack.c.bf16 %v162, %v161
    %v167 = vunpack.c.l.b16 %v165
    %v168 = vunpack.c.h.b16 %v165
    %v169 = vpack.c.b16 %v167, %v167
    %v170 = vpack.c.b16 %v168, %v168
    %v172 = vpack.i.b16 %v169, %v169
    %v174 = vperm.slane %v172, 0
    %v176 = vpack.i.b16 %v170, %v170
    %v178 = vperm.slane %v176, 0
    %v179 = vunpack.c.l.bf16 %v151
    %v180 = vunpack.c.h.bf16 %v151
    %v181 = vunpack.c.l.bf16 %v152
    %v182 = vunpack.c.h.bf16 %v152
    %v183 = vunpack.c.l.bf16 %v153
    %v184 = vunpack.c.h.bf16 %v153
    %v185 = vunpack.c.l.bf16 %v154
    %v186 = vunpack.c.h.bf16 %v154
    %v187 = vunpack.c.l.bf16 %v155
    %v188 = vunpack.c.h.bf16 %v155
    %v189 = vunpack.c.l.bf16 %v156
    %v190 = vunpack.c.h.bf16 %v156
    %v191 = vunpack.c.l.bf16 %v157
    %v192 = vunpack.c.h.bf16 %v157
    %v193 = vunpack.c.l.bf16 %v158
    %v194 = vunpack.c.h.bf16 %v158
    %v195 = vunpack.c.l.bf16 %v174
    %v196 = vunpack.c.l.bf16 %v178
    %v197 = vadd.f32 %v179, %v195
    %v198 = vadd.f32 %v180, %v196
    %v199 = vadd.f32 %v181, %v195
    %v200 = vadd.f32 %v182, %v196
    %v201 = vadd.f32 %v183, %v195
    %v202 = vadd.f32 %v184, %v196
    %v203 = vadd.f32 %v185, %v195
    %v204 = vadd.f32 %v186, %v196
    %v205 = vadd.f32 %v187, %v195
    %v206 = vadd.f32 %v188, %v196
    %v207 = vadd.f32 %v189, %v195
    %v208 = vadd.f32 %v190, %v196
    %v209 = vadd.f32 %v191, %v195
    %v210 = vadd.f32 %v192, %v196
    %v211 = vadd.f32 %v193, %v195
    %v212 = vadd.f32 %v194, %v196
    %v213 = vpack.c.bf16 %v198, %v197
    %v214 = vpack.c.bf16 %v200, %v199
    %v215 = vpack.c.bf16 %v202, %v201
    %v216 = vpack.c.bf16 %v204, %v203
    %v217 = vpack.c.bf16 %v206, %v205
    %v218 = vpack.c.bf16 %v208, %v207
    %v219 = vpack.c.bf16 %v210, %v209
    %v220 = vpack.c.bf16 %v212, %v211
    %v221 = vunpack.c.l.bf16 %v213
    %v222 = vunpack.c.h.bf16 %v213
    %v223 = vunpack.c.l.bf16 %v214
    %v224 = vunpack.c.h.bf16 %v214
    %v225 = vunpack.c.l.bf16 %v215
    %v226 = vunpack.c.h.bf16 %v215
    %v227 = vunpack.c.l.bf16 %v216
    %v228 = vunpack.c.h.bf16 %v216
    %v229 = vunpack.c.l.bf16 %v217
    %v230 = vunpack.c.h.bf16 %v217
    %v231 = vunpack.c.l.bf16 %v218
    %v232 = vunpack.c.h.bf16 %v218
    %v233 = vunpack.c.l.bf16 %v219
    %v234 = vunpack.c.h.bf16 %v219
    %v235 = vunpack.c.l.bf16 %v220
    %v236 = vunpack.c.h.bf16 %v220
    %v237 = vmax.f32 %v221, 0.0
    %v238 = vmax.f32 %v222, 0.0
    %v239 = vmax.f32 %v223, 0.0
    %v240 = vmax.f32 %v224, 0.0
    %v241 = vmax.f32 %v225, 0.0
    %v242 = vmax.f32 %v226, 0.0
    %v243 = vmax.f32 %v227, 0.0
    %v244 = vmax.f32 %v228, 0.0
    %v245 = vmax.f32 %v229, 0.0
    %v246 = vmax.f32 %v230, 0.0
    %v247 = vmax.f32 %v231, 0.0
    %v248 = vmax.f32 %v232, 0.0
    %v249 = vmax.f32 %v233, 0.0
    %v250 = vmax.f32 %v234, 0.0
    %v251 = vmax.f32 %v235, 0.0
    %v252 = vmax.f32 %v236, 0.0
    %v253 = vpack.c.bf16 %v239, %v237
    %v254 = vpack.c.bf16 %v240, %v238
    %v255 = vpack.c.bf16 %v243, %v241
    %v256 = vpack.c.bf16 %v244, %v242
    %v257 = vpack.c.bf16 %v247, %v245
    %v258 = vpack.c.bf16 %v248, %v246
    %v259 = vpack.c.bf16 %v251, %v249
    %v260 = vpack.c.bf16 %v252, %v250
    %v261 = vld [vmem:[#allocation2] sm:$0xf]
    %v262 = vld [vmem:[#allocation2 + $0x4] sm:$0xf]
    %v263 = vld [vmem:[#allocation2 + $0x8] sm:$0xf]
    %v264 = vld [vmem:[#allocation2 + $0xc] sm:$0xf]
    %v265 = vld [vmem:[#allocation2 + $0x10] sm:$0xf]
    %v266 = vld [vmem:[#allocation2 + $0x14] sm:$0xf]
    %v267 = vld [vmem:[#allocation2 + $0x18] sm:$0xf]
    %v268 = vld [vmem:[#allocation2 + $0x1c] sm:$0xf]
    %v269 = vld [vmem:[#allocation2 + $0x20] sm:$0xf]
    %v270 = vld [vmem:[#allocation2 + $0x24] sm:$0xf]
    %v271 = vld [vmem:[#allocation2 + $0x28] sm:$0xf]
    %v272 = vld [vmem:[#allocation2 + $0x2c] sm:$0xf]
    %v273 = vld [vmem:[#allocation2 + $0x30] sm:$0xf]
    %v274 = vld [vmem:[#allocation2 + $0x34] sm:$0xf]
    %v275 = vld [vmem:[#allocation2 + $0x38] sm:$0xf]
    %v276 = vld [vmem:[#allocation2 + $0x3c] sm:$0xf]
    %v277 = vld [vmem:[#allocation2 + $0x40] sm:$0xf]
    %v278 = vld [vmem:[#allocation2 + $0x44] sm:$0xf]
    %v279 = vld [vmem:[#allocation2 + $0x48] sm:$0xf]
    %v280 = vld [vmem:[#allocation2 + $0x4c] sm:$0xf]
    %v281 = vld [vmem:[#allocation2 + $0x50] sm:$0xf]
    %v282 = vld [vmem:[#allocation2 + $0x54] sm:$0xf]
    %v283 = vld [vmem:[#allocation2 + $0x58] sm:$0xf]
    %v284 = vld [vmem:[#allocation2 + $0x5c] sm:$0xf]
    %v285 = vld [vmem:[#allocation2 + $0x60] sm:$0xf]
    %v286 = vld [vmem:[#allocation2 + $0x64] sm:$0xf]
    %v287 = vld [vmem:[#allocation2 + $0x68] sm:$0xf]
    %v288 = vld [vmem:[#allocation2 + $0x6c] sm:$0xf]
    %v289 = vld [vmem:[#allocation2 + $0x70] sm:$0xf]
    %v290 = vld [vmem:[#allocation2 + $0x74] sm:$0xf]
    %v291 = vld [vmem:[#allocation2 + $0x78] sm:$0xf]
    %v292 = vld [vmem:[#allocation2 + $0x7c] sm:$0xf]
    %v325 = vunpack.c.l.b16 %v261
    %v326 = vunpack.c.l.b16 %v262
    %v327 = vunpack.c.l.b16 %v263
    %v328 = vunpack.c.l.b16 %v264
    %v329 = vunpack.c.l.b16 %v265
    %v330 = vunpack.c.l.b16 %v266
    %v331 = vunpack.c.l.b16 %v267
    %v332 = vunpack.c.l.b16 %v268
    %v333 = vunpack.c.l.b16 %v269
    %v334 = vunpack.c.l.b16 %v270
    %v335 = vunpack.c.l.b16 %v271
    %v336 = vunpack.c.l.b16 %v272
    %v337 = vunpack.c.l.b16 %v273
    %v338 = vunpack.c.l.b16 %v274
    %v339 = vunpack.c.l.b16 %v275
    %v340 = vunpack.c.l.b16 %v276
    %v341 = vunpack.c.l.b16 %v277
    %v342 = vunpack.c.l.b16 %v278
    %v343 = vunpack.c.l.b16 %v279
    %v344 = vunpack.c.l.b16 %v280
    %v345 = vunpack.c.l.b16 %v281
    %v346 = vunpack.c.l.b16 %v282
    %v347 = vunpack.c.l.b16 %v283
    %v348 = vunpack.c.l.b16 %v284
    %v349 = vunpack.c.l.b16 %v285
    %v350 = vunpack.c.l.b16 %v286
    %v351 = vunpack.c.l.b16 %v287
    %v352 = vunpack.c.l.b16 %v288
    %v353 = vunpack.c.l.b16 %v289
    %v354 = vunpack.c.l.b16 %v290
    %v355 = vunpack.c.l.b16 %v291
    %v356 = vunpack.c.l.b16 %v292
    %v357 = vpack.c.b16 %v326, %v325
    %v358 = vpack.c.b16 %v328, %v327
    %v359 = vpack.c.b16 %v330, %v329
    %v360 = vpack.c.b16 %v332, %v331
    %v361 = vpack.c.b16 %v334, %v333
    %v362 = vpack.c.b16 %v336, %v335
    %v363 = vpack.c.b16 %v338, %v337
    %v364 = vpack.c.b16 %v340, %v339
    %v365 = vpack.c.b16 %v342, %v341
    %v366 = vpack.c.b16 %v344, %v343
    %v367 = vpack.c.b16 %v346, %v345
    %v368 = vpack.c.b16 %v348, %v347
    %v369 = vpack.c.b16 %v350, %v349
    %v370 = vpack.c.b16 %v352, %v351
    %v371 = vpack.c.b16 %v354, %v353
    %v372 = vpack.c.b16 %v356, %v355
    %389 = vmatpush.bf16.msra.mxu0 %v364
    %390 = vmatpush.bf16.msra.mxu0 %v363
    %391 = vmatpush.bf16.msra.mxu0 %v362
    %392 = vmatpush.bf16.msra.mxu0 %v361
    %393 = vmatpush.bf16.msra.mxu0 %v360
    %394 = vmatpush.bf16.msra.mxu0 %v359
    %395 = vmatpush.bf16.msra.mxu0 %v358
    %396 = vmatpush.bf16.msra.mxu0 %v357
    %397 = vmatmul.bf16.gmra.mxu0 %v253
    %v398 = vpop.f32.mrf.mxu0
    %v399 = vadd.f32 0.0, %v398
    %v400 = vpop.f32.mrf.mxu0
    %v401 = vadd.f32 0.0, %v400
    %402 = vmatmul.bf16.gmra.mxu0 %v255
    %v403 = vpop.f32.mrf.mxu0
    %v404 = vadd.f32 0.0, %v403
    %v405 = vpop.f32.mrf.mxu0
    %v406 = vadd.f32 0.0, %v405
    %407 = vmatmul.bf16.gmra.mxu0 %v257
    %v408 = vpop.f32.mrf.mxu0
    %v409 = vadd.f32 0.0, %v408
    %v410 = vpop.f32.mrf.mxu0
    %v411 = vadd.f32 0.0, %v410
    %412 = vmatmul.bf16.gmra.mxu0 %v259
    %v413 = vpop.f32.mrf.mxu0
    %v414 = vadd.f32 0.0, %v413
    %v415 = vpop.f32.mrf.mxu0
    %v416 = vadd.f32 0.0, %v415
    %417 = vdwg.mxu0
    %418 = vmatpush.bf16.msra.mxu0 %v372
    %419 = vmatpush.bf16.msra.mxu0 %v371
    %420 = vmatpush.bf16.msra.mxu0 %v370
    %421 = vmatpush.bf16.msra.mxu0 %v369
    %422 = vmatpush.bf16.msra.mxu0 %v368
    %423 = vmatpush.bf16.msra.mxu0 %v367
    %424 = vmatpush.bf16.msra.mxu0 %v366
    %425 = vmatpush.bf16.msra.mxu0 %v365
    %426 = vmatmul.bf16.gmra.mxu0 %v254
    %v427 = vpop.f32.mrf.mxu0
    %v428 = vadd.f32 %v399, %v427
    %v429 = vpop.f32.mrf.mxu0
    %v430 = vadd.f32 %v401, %v429
    %431 = vmatmul.bf16.gmra.mxu0 %v256
    %v432 = vpop.f32.mrf.mxu0
    %v433 = vadd.f32 %v404, %v432
    %v434 = vpop.f32.mrf.mxu0
    %v435 = vadd.f32 %v406, %v434
    %436 = vmatmul.bf16.gmra.mxu0 %v258
    %v437 = vpop.f32.mrf.mxu0
    %v438 = vadd.f32 %v409, %v437
    %v439 = vpop.f32.mrf.mxu0
    %v440 = vadd.f32 %v411, %v439
    %441 = vmatmul.bf16.gmra.mxu0 %v260
    %v442 = vpop.f32.mrf.mxu0
    %v443 = vadd.f32 %v414, %v442
    %v444 = vpop.f32.mrf.mxu0
    %v445 = vadd.f32 %v416, %v444
    %446 = vdwg.mxu0
    %v447 = vpack.c.bf16 %v428, %v428
    %v448 = vpack.c.bf16 %v430, %v430
    %v449 = vpack.c.bf16 %v433, %v433
    %v450 = vpack.c.bf16 %v435, %v435
    %v451 = vpack.c.bf16 %v438, %v438
    %v452 = vpack.c.bf16 %v440, %v440
    %v453 = vpack.c.bf16 %v443, %v443
    %v454 = vpack.c.bf16 %v445, %v445
    %v455 = vld [vmem:[%s4] sm:$0x1]
    %v456 = vpack.c.bf16 %v455, %v455
    %v458 = vpack.i.b16 %v456, %v456
    %v460 = vperm.slane %v458, 0
    %v461 = vunpack.c.l.bf16 %v447
    %v462 = vunpack.c.l.bf16 %v448
    %v463 = vunpack.c.l.bf16 %v449
    %v464 = vunpack.c.l.bf16 %v450
    %v465 = vunpack.c.l.bf16 %v451
    %v466 = vunpack.c.l.bf16 %v452
    %v467 = vunpack.c.l.bf16 %v453
    %v468 = vunpack.c.l.bf16 %v454
    %v469 = vunpack.c.l.bf16 %v460
    %v470 = vadd.f32 %v461, %v469
    %v471 = vadd.f32 %v462, %v469
    %v472 = vadd.f32 %v463, %v469
    %v473 = vadd.f32 %v464, %v469
    %v474 = vadd.f32 %v465, %v469
    %v475 = vadd.f32 %v466, %v469
    %v476 = vadd.f32 %v467, %v469
    %v477 = vadd.f32 %v468, %v469
    %v478 = vpack.c.bf16 %v470, %v470
    %v479 = vpack.c.bf16 %v471, %v471
    %v480 = vpack.c.bf16 %v472, %v472
    %v481 = vpack.c.bf16 %v473, %v473
    %v482 = vpack.c.bf16 %v474, %v474
    %v483 = vpack.c.bf16 %v475, %v475
    %v484 = vpack.c.bf16 %v476, %v476
    %v485 = vpack.c.bf16 %v477, %v477
    %v486 = vunpack.c.l.bf16 %v478
    %v487 = vunpack.c.l.bf16 %v479
    %v488 = vunpack.c.l.bf16 %v480
    %v489 = vunpack.c.l.bf16 %v481
    %v490 = vunpack.c.l.bf16 %v482
    %v491 = vunpack.c.l.bf16 %v483
    %v492 = vunpack.c.l.bf16 %v484
    %v493 = vunpack.c.l.bf16 %v485
    %v494 = vmax.f32 %v486, 0.0
    %v495 = vmax.f32 %v487, 0.0
    %v496 = vmax.f32 %v488, 0.0
    %v497 = vmax.f32 %v489, 0.0
    %v498 = vmax.f32 %v490, 0.0
    %v499 = vmax.f32 %v491, 0.0
    %v500 = vmax.f32 %v492, 0.0
    %v501 = vmax.f32 %v493, 0.0
    %v502 = vpack.c.bf16 %v495, %v494
    %v503 = vpack.c.bf16 %v497, %v496
    %v504 = vpack.c.bf16 %v499, %v498
    %v505 = vpack.c.bf16 %v501, %v500
    %v506 = vld [vmem:[%s5] sm:$0xf]
    %v507 = vld [vmem:[%s5 + $0x4] sm:$0xf]
    %v508 = vld [vmem:[%s5 + $0x8] sm:$0xf]
    %v509 = vld [vmem:[%s5 + $0xc] sm:$0xf]
    %v510 = vld [vmem:[%s5 + $0x10] sm:$0xf]
    %v511 = vld [vmem:[%s5 + $0x14] sm:$0xf]
    %v512 = vld [vmem:[%s5 + $0x18] sm:$0xf]
    %v513 = vld [vmem:[%s5 + $0x1c] sm:$0xf]
    %v514 = vld [vmem:[%s5 + $0x20] sm:$0xf]
    %v515 = vld [vmem:[%s5 + $0x24] sm:$0xf]
    %v516 = vld [vmem:[%s5 + $0x28] sm:$0xf]
    %v517 = vld [vmem:[%s5 + $0x2c] sm:$0xf]
    %v518 = vld [vmem:[%s5 + $0x30] sm:$0xf]
    %v519 = vld [vmem:[%s5 + $0x34] sm:$0xf]
    %v520 = vld [vmem:[%s5 + $0x38] sm:$0xf]
    %v521 = vld [vmem:[%s5 + $0x3c] sm:$0xf]
    %v522 = vld [vmem:[%s6] sm:$0x1]
    %v524 = vperm.slane %v522, 0
    %v542 = vunpack.c.l.b16 %v506
    %v543 = vunpack.c.l.b16 %v507
    %v544 = vunpack.c.l.b16 %v508
    %v545 = vunpack.c.l.b16 %v509
    %v546 = vunpack.c.l.b16 %v510
    %v547 = vunpack.c.l.b16 %v511
    %v548 = vunpack.c.l.b16 %v512
    %v549 = vunpack.c.l.b16 %v513
    %v550 = vunpack.c.l.b16 %v514
    %v551 = vunpack.c.l.b16 %v515
    %v552 = vunpack.c.l.b16 %v516
    %v553 = vunpack.c.l.b16 %v517
    %v554 = vunpack.c.l.b16 %v518
    %v555 = vunpack.c.l.b16 %v519
    %v556 = vunpack.c.l.b16 %v520
    %v557 = vunpack.c.l.b16 %v521
    %v558 = vpack.c.b16 %v543, %v542
    %v559 = vpack.c.b16 %v545, %v544
    %v560 = vpack.c.b16 %v547, %v546
    %v561 = vpack.c.b16 %v549, %v548
    %v562 = vpack.c.b16 %v551, %v550
    %v563 = vpack.c.b16 %v553, %v552
    %v564 = vpack.c.b16 %v555, %v554
    %v565 = vpack.c.b16 %v557, %v556
    %574 = vmatpush.bf16.msra.mxu0 %v565
    %575 = vmatpush.bf16.msra.mxu0 %v564
    %576 = vmatpush.bf16.msra.mxu0 %v563
    %577 = vmatpush.bf16.msra.mxu0 %v562
    %578 = vmatpush.bf16.msra.mxu0 %v561
    %579 = vmatpush.bf16.msra.mxu0 %v560
    %580 = vmatpush.bf16.msra.mxu0 %v559
    %581 = vmatpush.bf16.msra.mxu0 %v558
    %582 = vmatmul.bf16.gmra.mxu0 %v502
    %v583 = vpop.f32.mrf.mxu0
    %v584 = vadd.f32 %v524, %v583
    %v585 = vpop.f32.mrf.mxu0
    %v586 = vadd.f32 %v524, %v585
    %587 = vmatmul.bf16.gmra.mxu0 %v503
    %v588 = vpop.f32.mrf.mxu0
    %v589 = vadd.f32 %v524, %v588
    %v590 = vpop.f32.mrf.mxu0
    %v591 = vadd.f32 %v524, %v590
    %592 = vmatmul.bf16.gmra.mxu0 %v504
    %v593 = vpop.f32.mrf.mxu0
    %v594 = vadd.f32 %v524, %v593
    %v595 = vpop.f32.mrf.mxu0
    %v596 = vadd.f32 %v524, %v595
    %597 = vmatmul.bf16.gmra.mxu0 %v505
    %v598 = vpop.f32.mrf.mxu0
    %v599 = vadd.f32 %v524, %v598
    %v600 = vpop.f32.mrf.mxu0
    %v601 = vadd.f32 %v524, %v600
    %602 = vdwg.mxu0
    %603 = vmax.xlane.f32.xlu0 %v584
    %v604 = vpop.xlane.xlu0 %603
    %605 = vmax.xlane.f32.xlu0 %v586
    %v606 = vpop.xlane.xlu0 %605
    %607 = vmax.xlane.f32.xlu0 %v589
    %v608 = vpop.xlane.xlu0 %607
    %609 = vmax.xlane.f32.xlu0 %v591
    %v610 = vpop.xlane.xlu0 %609
    %611 = vmax.xlane.f32.xlu0 %v594
    %v612 = vpop.xlane.xlu0 %611
    %613 = vmax.xlane.f32.xlu0 %v596
    %v614 = vpop.xlane.xlu0 %613
    %615 = vmax.xlane.f32.xlu0 %v599
    %v616 = vpop.xlane.xlu0 %615
    %617 = vmax.xlane.f32.xlu0 %v601
    %v618 = vpop.xlane.xlu0 %617
    %v619 = vsub.f32 %v584, %v604
    %v620 = vsub.f32 %v586, %v606
    %v621 = vsub.f32 %v589, %v608
    %v622 = vsub.f32 %v591, %v610
    %v623 = vsub.f32 %v594, %v612
    %v624 = vsub.f32 %v596, %v614
    %v625 = vsub.f32 %v599, %v616
    %v626 = vsub.f32 %v601, %v618
    %v627 = vmul.f32 %v619, 1.442695
    %v628 = vpow.pop %v627
    %v629 = vmul.f32 %v620, 1.442695
    %v630 = vpow.pop %v629
    %v631 = vmul.f32 %v621, 1.442695
    %v632 = vpow.pop %v631
    %v633 = vmul.f32 %v622, 1.442695
    %v634 = vpow.pop %v633
    %v635 = vmul.f32 %v623, 1.442695
    %v636 = vpow.pop %v635
    %v637 = vmul.f32 %v624, 1.442695
    %v638 = vpow.pop %v637
    %v639 = vmul.f32 %v625, 1.442695
    %v640 = vpow.pop %v639
    %v641 = vmul.f32 %v626, 1.442695
    %v642 = vpow.pop %v641
    %643 = vadd.xlane.f32.xlu0 %v628
    %v644 = vpop.xlane.xlu0 %643
    %645 = vadd.xlane.f32.xlu0 %v630
    %v646 = vpop.xlane.xlu0 %645
    %647 = vadd.xlane.f32.xlu0 %v632
    %v648 = vpop.xlane.xlu0 %647
    %649 = vadd.xlane.f32.xlu0 %v634
    %v650 = vpop.xlane.xlu0 %649
    %651 = vadd.xlane.f32.xlu0 %v636
    %v652 = vpop.xlane.xlu0 %651
    %653 = vadd.xlane.f32.xlu0 %v638
    %v654 = vpop.xlane.xlu0 %653
    %655 = vadd.xlane.f32.xlu0 %v640
    %v656 = vpop.xlane.xlu0 %655
    %657 = vadd.xlane.f32.xlu0 %v642
    %v658 = vpop.xlane.xlu0 %657
    %v659 = vrcp.pop %v644
    %v660 = vmul.f32 %v644, %v659
    %v661 = vsub.f32 1.0, %v660
    %v662 = vmul.f32 %v659, %v661
    %v663 = vadd.f32 %v659, %v662
    %vm664 = vweird.f32 %v644
    %vm665 = vweird.f32 %v659
    %vm666 = vmor %vm664, %vm665
    %v667 = vsel %vm666, %v659, %v663
    %v668 = vand.u32 2147483647, %v644
    %vm669 = vcmp.eq.f32.partialorder %v668, 8.507059e+37
    %v670 = vand.u32 %v644, 2147483648
    %v671 = vor.u32 1.1754944e-38, %v670
    %v672 = vsel %vm669, %v671, %v667
    %v673 = vmul.f32 %v628, %v672
    %v674 = vrcp.pop %v646
    %v675 = vmul.f32 %v646, %v674
    %v676 = vsub.f32 1.0, %v675
    %v677 = vmul.f32 %v674, %v676
    %v678 = vadd.f32 %v674, %v677
    %vm679 = vweird.f32 %v646
    %vm680 = vweird.f32 %v674
    %vm681 = vmor %vm679, %vm680
    %v682 = vsel %vm681, %v674, %v678
    %v683 = vand.u32 2147483647, %v646
    %vm684 = vcmp.eq.f32.partialorder %v683, 8.507059e+37
    %v685 = vand.u32 %v646, 2147483648
    %v686 = vor.u32 1.1754944e-38, %v685
    %v687 = vsel %vm684, %v686, %v682
    %v688 = vmul.f32 %v630, %v687
    %v689 = vrcp.pop %v648
    %v690 = vmul.f32 %v648, %v689
    %v691 = vsub.f32 1.0, %v690
    %v692 = vmul.f32 %v689, %v691
    %v693 = vadd.f32 %v689, %v692
    %vm694 = vweird.f32 %v648
    %vm695 = vweird.f32 %v689
    %vm696 = vmor %vm694, %vm695
    %v697 = vsel %vm696, %v689, %v693
    %v698 = vand.u32 2147483647, %v648
    %vm699 = vcmp.eq.f32.partialorder %v698, 8.507059e+37
    %v700 = vand.u32 %v648, 2147483648
    %v701 = vor.u32 1.1754944e-38, %v700
    %v702 = vsel %vm699, %v701, %v697
    %v703 = vmul.f32 %v632, %v702
    %v704 = vrcp.pop %v650
    %v705 = vmul.f32 %v650, %v704
    %v706 = vsub.f32 1.0, %v705
    %v707 = vmul.f32 %v704, %v706
    %v708 = vadd.f32 %v704, %v707
    %vm709 = vweird.f32 %v650
    %vm710 = vweird.f32 %v704
    %vm711 = vmor %vm709, %vm710
    %v712 = vsel %vm711, %v704, %v708
    %v713 = vand.u32 2147483647, %v650
    %vm714 = vcmp.eq.f32.partialorder %v713, 8.507059e+37
    %v715 = vand.u32 %v650, 2147483648
    %v716 = vor.u32 1.1754944e-38, %v715
    %v717 = vsel %vm714, %v716, %v712
    %v718 = vmul.f32 %v634, %v717
    %v719 = vrcp.pop %v652
    %v720 = vmul.f32 %v652, %v719
    %v721 = vsub.f32 1.0, %v720
    %v722 = vmul.f32 %v719, %v721
    %v723 = vadd.f32 %v719, %v722
    %vm724 = vweird.f32 %v652
    %vm725 = vweird.f32 %v719
    %vm726 = vmor %vm724, %vm725
    %v727 = vsel %vm726, %v719, %v723
    %v728 = vand.u32 2147483647, %v652
    %vm729 = vcmp.eq.f32.partialorder %v728, 8.507059e+37
    %v730 = vand.u32 %v652, 2147483648
    %v731 = vor.u32 1.1754944e-38, %v730
    %v732 = vsel %vm729, %v731, %v727
    %v733 = vmul.f32 %v636, %v732
    %v734 = vrcp.pop %v654
    %v735 = vmul.f32 %v654, %v734
    %v736 = vsub.f32 1.0, %v735
    %v737 = vmul.f32 %v734, %v736
    %v738 = vadd.f32 %v734, %v737
    %vm739 = vweird.f32 %v654
    %vm740 = vweird.f32 %v734
    %vm741 = vmor %vm739, %vm740
    %v742 = vsel %vm741, %v734, %v738
    %v743 = vand.u32 2147483647, %v654
    %vm744 = vcmp.eq.f32.partialorder %v743, 8.507059e+37
    %v745 = vand.u32 %v654, 2147483648
    %v746 = vor.u32 1.1754944e-38, %v745
    %v747 = vsel %vm744, %v746, %v742
    %v748 = vmul.f32 %v638, %v747
    %v749 = vrcp.pop %v656
    %v750 = vmul.f32 %v656, %v749
    %v751 = vsub.f32 1.0, %v750
    %v752 = vmul.f32 %v749, %v751
    %v753 = vadd.f32 %v749, %v752
    %vm754 = vweird.f32 %v656
    %vm755 = vweird.f32 %v749
    %vm756 = vmor %vm754, %vm755
    %v757 = vsel %vm756, %v749, %v753
    %v758 = vand.u32 2147483647, %v656
    %vm759 = vcmp.eq.f32.partialorder %v758, 8.507059e+37
    %v760 = vand.u32 %v656, 2147483648
    %v761 = vor.u32 1.1754944e-38, %v760
    %v762 = vsel %vm759, %v761, %v757
    %v763 = vmul.f32 %v640, %v762
    %v764 = vrcp.pop %v658
    %v765 = vmul.f32 %v658, %v764
    %v766 = vsub.f32 1.0, %v765
    %v767 = vmul.f32 %v764, %v766
    %v768 = vadd.f32 %v764, %v767
    %vm769 = vweird.f32 %v658
    %vm770 = vweird.f32 %v764
    %vm771 = vmor %vm769, %vm770
    %v772 = vsel %vm771, %v764, %v768
    %v773 = vand.u32 2147483647, %v658
    %vm774 = vcmp.eq.f32.partialorder %v773, 8.507059e+37
    %v775 = vand.u32 %v658, 2147483648
    %v776 = vor.u32 1.1754944e-38, %v775
    %v777 = vsel %vm774, %v776, %v772
    %v778 = vmul.f32 %v642, %v777
    %v779 = vpack.c.bf16 %v673, %v673
    %v780 = vpack.c.bf16 %v688, %v688
    %v781 = vpack.c.bf16 %v703, %v703
    %v782 = vpack.c.bf16 %v718, %v718
    %v783 = vpack.c.bf16 %v733, %v733
    %v784 = vpack.c.bf16 %v748, %v748
    %v785 = vpack.c.bf16 %v763, %v763
    %v786 = vpack.c.bf16 %v778, %v778
    %787 = vst [vmem:[#allocation5] sm:$0xf] %v779
    %788 = vst [vmem:[#allocation5 + $0x4] sm:$0xf] %v780
    %789 = vst [vmem:[#allocation5 + $0x8] sm:$0xf] %v781
    %790 = vst [vmem:[#allocation5 + $0xc] sm:$0xf] %v782
    %791 = vst [vmem:[#allocation5 + $0x10] sm:$0xf] %v783
    %792 = vst [vmem:[#allocation5 + $0x14] sm:$0xf] %v784
    %793 = vst [vmem:[#allocation5 + $0x18] sm:$0xf] %v785
    %794 = vst [vmem:[#allocation5 + $0x1c] sm:$0xf] %v786
    // Predicated region
    $region34: #{tpu_custom_call.1} parent=1 // pred_check
      _
    $region35: #{tpu_custom_call.1} parent=1 // pred_check_branch
      %796 = sbr.rel (0) target = $region37
    $region36: #{tpu_custom_call.1} parent=1 // pred_region
      %798 = vsyncadd [#allocation4], 0
      %s799 = sshll.u32 [#allocation5], 4
      %s800 = int_to_ptr.vmem [resolvable:$true] %s799
      %s801 = sshll.u32 %s7, 4
      %s802 = int_to_ptr.hbm [resolvable:$true] %s801
      %807 = dma.vmem_to_hbm [thread:$0]  %s800, 512, %s802, [#allocation4], 64, 64, 4
    $region37: #{tpu_custom_call.1} parent=1 // pred_fallthru
      _
    // Predicated region
    $region38: #{tpu_custom_call.1} parent=1 // pred_check
      _
    $region39: #{tpu_custom_call.1} parent=1 // pred_check_branch
      %809 = sbr.rel (0) target = $region41
    $region40: #{tpu_custom_call.1} parent=1 // pred_region
      %811 = dma.done [#allocation4], 512
    $region41: #{tpu_custom_call.1} parent=1 // pred_fallthru
      _
    %812 = vsyncpa [#allocation3], 1
    %813 = vsyncpa [#allocation4], 1

</llo_original>
